<compile_context>
chip_gen: v7x
topology: tpu7x:2x2x1
jax: 0.10.0
libtpu: 0.0.40
codegen_flags: <defaults>
</compile_context>

<pallas_src>
import functools

import jax
import jax.numpy as jnp
from jax.experimental import pallas as pl
from jax.experimental.pallas import tpu as pltpu

HIDDEN = 128  # fixed by the module definition (encoder out / decoder in)

_VMEM_CAP = None


def _round_up(x, m):
    return ((x + m - 1) // m) * m


def _vmem_capacity_bytes():
    """Per-core VMEM capacity; conservative 64 MiB (v7x) fallback."""
    global _VMEM_CAP
    if _VMEM_CAP is None:
        cap = 64 * 1024 * 1024
        try:
            info = pltpu.get_tpu_info()
            c = getattr(info, "vmem_capacity_bytes", None)
            if c:
                cap = int(c)
        except Exception:
            pass
        _VMEM_CAP = cap
    return _VMEM_CAP


# --------------------------------------------------------------------------- #
# Kernels
# --------------------------------------------------------------------------- #
def ae_fused_kernel(x_ref, w1_ref, b1_ref, w2_ref, b2_ref, o_ref):
    """Fused encoder -> ReLU -> decoder -> ReLU for one batch tile (weights resident)."""
    x = x_ref[...].astype(jnp.bfloat16)
    w1 = w1_ref[...].astype(jnp.bfloat16)
    h = jnp.dot(x, w1, preferred_element_type=jnp.float32) + b1_ref[...]
    h = jnp.maximum(h, 0.0).astype(jnp.bfloat16)
    w2 = w2_ref[...].astype(jnp.bfloat16)
    y = jnp.dot(h, w2, preferred_element_type=jnp.float32) + b2_ref[...]
    o_ref[...] = jnp.maximum(y, 0.0).astype(o_ref.dtype)


def ae_ntiled_kernel(x_ref, w1_ref, b1_ref, w2_ref, b2_ref, o_ref, h_ref):
    """Large-D path: grid = (batch tiles, N tiles of the decoder output).

    The hidden activation for the current batch tile is computed once (n == 0)
    into a bf16 VMEM scratch and reused for every N tile; W2/b2 stream per N tile.
    """
    @pl.when(pl.program_id(1) == 0)
    def _():
        x = x_ref[...].astype(jnp.bfloat16)
        w1 = w1_ref[...].astype(jnp.bfloat16)
        h = jnp.dot(x, w1, preferred_element_type=jnp.float32) + b1_ref[...]
        h_ref[...] = jnp.maximum(h, 0.0).astype(h_ref.dtype)

    w2 = w2_ref[...].astype(jnp.bfloat16)
    y = jnp.dot(h_ref[...], w2, preferred_element_type=jnp.float32) + b2_ref[...]
    o_ref[...] = jnp.maximum(y, 0.0).astype(o_ref.dtype)


# --------------------------------------------------------------------------- #
# Tiling policy
# --------------------------------------------------------------------------- #
def _choose_tiling(B, D):
    """Pick (tb, tn). tn is None for the fused (weights-resident) path."""
    itemsize = 4  # params / activations are f32 in HBM
    cap = _vmem_capacity_bytes()
    budget = (cap * 3) // 4              # ~48 MiB on v7x, ~96 MiB on v5e/v6e
    target_payload = 6 * 1024 * 1024     # x + out bytes moved per grid step

    w_fused = (D * HIDDEN + HIDDEN + HIDDEN * D + D) * itemsize
    if w_fused <= budget // 3:
        tn = None
        row_bytes = 2 * 2 * D * itemsize                       # x + out, double-buffered
        avail = max(budget - w_fused, row_bytes * 8)
    else:
        tn = min(_round_up(D, 128), 2048)
        row_bytes = (2 * D + 2 * tn) * itemsize + HIDDEN * 2    # + bf16 h scratch
        stream = (D * HIDDEN + HIDDEN) * itemsize + 2 * (HIDDEN * tn + tn) * itemsize
        avail = max(budget - stream, row_bytes * 8)

    # Scale the batch tile with D; keep it a multiple of 8 within the VMEM budget.
    tb = min(4096, max(128, _round_up(max(1, target_payload // (2 * D * itemsize)), 8)))
    tb_cap = max(8, (avail // row_bytes) // 8 * 8)
    tb = min(tb, tb_cap)
    if B >= 32:
        # >= 4 grid steps on the batch axis: each v7x TensorCore gets >= 2
        # pipelined steps (DMA-in / compute / DMA-out overlap within a core).
        tb = min(tb, max(8, _round_up(-(-B // 4), 8)))
    tb = int(max(8, min(tb, _round_up(B, 8))))
    return tb, (int(tn) if tn is not None else None)


def _vmem_limit(buffer_bytes):
    cap = _vmem_capacity_bytes()
    return int(max(24 * 1024 * 1024,
                   min(cap - 10 * 1024 * 1024, buffer_bytes + (4 << 20))))


# --------------------------------------------------------------------------- #
# pallas_call wrappers
# --------------------------------------------------------------------------- #
@functools.partial(jax.jit, static_argnames=("tb",))
def _ae_fused(x, w1, b1, w2, b2, *, tb):
    B, D = x.shape
    itemsize = 4
    w_bytes = (D * HIDDEN + HIDDEN + HIDDEN * D + D) * itemsize
    tile_bytes = 2 * 2 * tb * D * itemsize
    resident = pl.Buffered(1)  # constant block index -> single buffer
    cost = pl.CostEstimate(
        flops=4 * B * D * HIDDEN,
        transcendentals=0,
        bytes_accessed=(2 * B * D + 2 * D * HIDDEN + HIDDEN + D) * itemsize,
    )
    return pl.pallas_call(
        ae_fused_kernel,
        out_shape=jax.ShapeDtypeStruct((B, D), x.dtype),
        grid_spec=pltpu.PrefetchScalarGridSpec(
            num_scalar_prefetch=0,
            grid=(pl.cdiv(B, tb),),
            in_specs=[
                pl.BlockSpec((tb, D), lambda i: (i, 0)),                       # x tile
                pl.BlockSpec((D, HIDDEN), lambda i: (0, 0), pipeline_mode=resident),   # W1
                pl.BlockSpec((1, HIDDEN), lambda i: (0, 0), pipeline_mode=resident),   # b1
                pl.BlockSpec((HIDDEN, D), lambda i: (0, 0), pipeline_mode=resident),   # W2
                pl.BlockSpec((1, D), lambda i: (0, 0), pipeline_mode=resident),        # b2
            ],
            out_specs=pl.BlockSpec((tb, D), lambda i: (i, 0)),
        ),
        compiler_params=pltpu.CompilerParams(
            dimension_semantics=("parallel",),
            vmem_limit_bytes=_vmem_limit(tile_bytes + w_bytes),
        ),
        cost_estimate=cost,
    )(x, w1, b1, w2, b2)


@functools.partial(jax.jit, static_argnames=("tb", "tn"))
def _ae_ntiled(x, w1, b1, w2, b2, *, tb, tn):
    B, D = x.shape
    itemsize = 4
    buf_bytes = ((2 * tb * D + 2 * tb * tn                     # x + out, double-buffered
                  + D * HIDDEN + HIDDEN                        # resident W1, b1
                  + 2 * (HIDDEN * tn + tn)) * itemsize         # streamed W2, b2
                 + tb * HIDDEN * 2)                            # bf16 h scratch
    resident = pl.Buffered(1)
    cost = pl.CostEstimate(
        flops=4 * B * D * HIDDEN,
        transcendentals=0,
        bytes_accessed=(2 * B * D + 2 * D * HIDDEN + HIDDEN + D) * itemsize,
    )
    return pl.pallas_call(
        ae_ntiled_kernel,
        out_shape=jax.ShapeDtypeStruct((B, D), x.dtype),
        grid_spec=pltpu.PrefetchScalarGridSpec(
            num_scalar_prefetch=0,
            grid=(pl.cdiv(B, tb), pl.cdiv(D, tn)),
            in_specs=[
                pl.BlockSpec((tb, D), lambda i, n: (i, 0)),                        # x tile
                pl.BlockSpec((D, HIDDEN), lambda i, n: (0, 0), pipeline_mode=resident),  # W1
                pl.BlockSpec((1, HIDDEN), lambda i, n: (0, 0), pipeline_mode=resident),  # b1
                pl.BlockSpec((HIDDEN, tn), lambda i, n: (0, n)),                   # W2 stream
                pl.BlockSpec((1, tn), lambda i, n: (0, n)),                        # b2 stream
            ],
            out_specs=pl.BlockSpec((tb, tn), lambda i, n: (i, n)),
            scratch_shapes=[pltpu.VMEM((tb, HIDDEN), jnp.bfloat16)],
        ),
        compiler_params=pltpu.CompilerParams(
            dimension_semantics=("parallel", "arbitrary"),
            vmem_limit_bytes=_vmem_limit(buf_bytes),
        ),
        cost_estimate=cost,
    )(x, w1, b1, w2, b2)


def ae_forward(x, w1, b1, w2, b2, *, tb=None, tn=None):
    """x: (B, D) float32. Returns (B, D) float32 (= relu(relu(x@W1+b1)@W2+b2))."""
    B, D = x.shape
    if tb is None and tn is None:
        tb, tn = _choose_tiling(B, D)
    elif tb is None:
        tb, _ = _choose_tiling(B, D)
    if tn is None:
        return _ae_fused(x, w1, b1, w2, b2, tb=int(tb))
    return _ae_ntiled(x, w1, b1, w2, b2, tb=int(tb), tn=int(tn))


def ae_reference(x, w1, b1, w2, b2):
    h = jnp.maximum(x @ w1 + b1, 0.0)
    return jnp.maximum(h @ w2 + b2, 0.0)


def init_params(key, input_shape):
    """Synthetic init mimicking nn.Linear's uniform(-1/sqrt(in), 1/sqrt(in)).

    Weights are stored as (in_features, out_features), i.e. transposed relative
    to PyTorch's (out, in) storage, so the kernel computes x @ W + b.
    """
    k1, k2, k3, k4 = jax.random.split(key, 4)
    s1 = 1.0 / jnp.sqrt(jnp.float32(input_shape))
    s2 = 1.0 / jnp.sqrt(jnp.float32(HIDDEN))
    w1 = jax.random.uniform(k1, (input_shape, HIDDEN), jnp.float32, -s1, s1)
    b1 = jax.random.uniform(k2, (1, HIDDEN), jnp.float32, -s1, s1)
    w2 = jax.random.uniform(k3, (HIDDEN, input_shape), jnp.float32, -s2, s2)
    b2 = jax.random.uniform(k4, (1, input_shape), jnp.float32, -s2, s2)
    return w1, b1, w2, b2


if __name__ == "__main__":
    key = jax.random.PRNGKey(0)
    k_x, k_p = jax.random.split(key)

    B, D = 256, 256  # batch, input_shape (kwargs['input_shape'])
    x = jax.random.normal(k_x, (B, D), jnp.float32)
    w1, b1, w2, b2 = init_params(k_p, D)

    # fused (weights-resident) path — the auto-chosen path at this size
    out = ae_forward(x, w1, b1, w2, b2)
    jax.block_until_ready(out)
    ref = ae_reference(x, w1, b1, w2, b2)
    assert out.shape == (B, D)
    # bf16 MXU operands with f32 accumulation -> small, bounded deviation from f32 ref
    assert jnp.allclose(out, ref, atol=5e-2, rtol=5e-2), "mismatch vs reference (fused)"

    # batch that is not a multiple of the tile
    x_odd = jax.random.normal(k_x, (B + 24, D), jnp.float32)
    out_odd = ae_forward(x_odd, w1, b1, w2, b2)
    jax.block_until_ready(out_odd)
    assert jnp.allclose(out_odd, ae_reference(x_odd, w1, b1, w2, b2),
                        atol=5e-2, rtol=5e-2), "mismatch vs reference (odd batch)"

    # force the large-D N-tiled path at small shapes to exercise it (tn=128 -> 2 N steps)
    out_nt = ae_forward(x, w1, b1, w2, b2, tb=64, tn=128)
    jax.block_until_ready(out_nt)
    assert jnp.allclose(out_nt, ref, atol=5e-2, rtol=5e-2), "mismatch vs reference (N-tiled)"

    print("KERNEL_OK")
</pallas_src>

<mosaic_0001>
module attributes {stable_mosaic.version = 11 : i64} {
  func.func @ae_fused_kernel(%arg0: i32, %arg1: memref<64x256xf32, #tpu.memory_space<vmem>>, %arg2: memref<256x128xf32, #tpu.memory_space<vmem>>, %arg3: memref<1x128xf32, #tpu.memory_space<vmem>>, %arg4: memref<128x256xf32, #tpu.memory_space<vmem>>, %arg5: memref<1x256xf32, #tpu.memory_space<vmem>>, %arg6: memref<64x256xf32, #tpu.memory_space<vmem>>) attributes {dimension_semantics = [#tpu.dimension_semantics<parallel>], iteration_bounds = array<i64: 4>, scalar_prefetch = 0 : i64, scratch_operands = 0 : i64, tpu.core_type = #tpu.core_type<tc>, window_params = [{transform_indices = @transform_0, window_bounds = array<i64: 64, 256>}, {pipeline_mode = #tpu.pipeline_mode<synchronous>, transform_indices = @transform_1, window_bounds = array<i64: 256, 128>}, {pipeline_mode = #tpu.pipeline_mode<synchronous>, transform_indices = @transform_2, window_bounds = array<i64: 1, 128>}, {pipeline_mode = #tpu.pipeline_mode<synchronous>, transform_indices = @transform_3, window_bounds = array<i64: 128, 256>}, {pipeline_mode = #tpu.pipeline_mode<synchronous>, transform_indices = @transform_4, window_bounds = array<i64: 1, 256>}, {transform_indices = @transform_5, window_bounds = array<i64: 64, 256>}]} {
    %c0 = arith.constant 0 : index
    %c0_0 = arith.constant 0 : index
    %0 = vector.load %arg1[%c0, %c0_0] : memref<64x256xf32, #tpu.memory_space<vmem>>, vector<64x256xf32>
    %1 = arith.truncf %0 : vector<64x256xf32> to vector<64x256xbf16>
    %c0_1 = arith.constant 0 : index
    %c0_2 = arith.constant 0 : index
    %2 = vector.load %arg2[%c0_1, %c0_2] : memref<256x128xf32, #tpu.memory_space<vmem>>, vector<256x128xf32>
    %3 = arith.truncf %2 : vector<256x128xf32> to vector<256x128xbf16>
    %cst = arith.constant dense<0.000000e+00> : vector<64x128xf32>
    %4 = tpu.matmul %1, %3, %cst {dimension_numbers = #tpu.dot_dimension_numbers<[1], [0], [0], [1], [0, 0, 1, 1], [], []>} : vector<64x256xbf16>, vector<256x128xbf16>, vector<64x128xf32> -> vector<64x128xf32>
    %c0_3 = arith.constant 0 : index
    %c0_4 = arith.constant 0 : index
    %5 = vector.load %arg3[%c0_3, %c0_4] : memref<1x128xf32, #tpu.memory_space<vmem>>, vector<1x128xf32>
    %6 = vector.broadcast %5 : vector<1x128xf32> to vector<64x128xf32>
    %7 = arith.addf %4, %6 : vector<64x128xf32>
    %cst_5 = arith.constant 0.000000e+00 : f32
    %8 = vector.broadcast %cst_5 : f32 to vector<64x128xf32>
    %9 = arith.maximumf %7, %8 : vector<64x128xf32>
    %10 = arith.truncf %9 : vector<64x128xf32> to vector<64x128xbf16>
    %c0_6 = arith.constant 0 : index
    %c0_7 = arith.constant 0 : index
    %11 = vector.load %arg4[%c0_6, %c0_7] : memref<128x256xf32, #tpu.memory_space<vmem>>, vector<128x256xf32>
    %12 = arith.truncf %11 : vector<128x256xf32> to vector<128x256xbf16>
    %cst_8 = arith.constant dense<0.000000e+00> : vector<64x256xf32>
    %13 = tpu.matmul %10, %12, %cst_8 {dimension_numbers = #tpu.dot_dimension_numbers<[1], [0], [0], [1], [0, 0, 1, 1], [], []>} : vector<64x128xbf16>, vector<128x256xbf16>, vector<64x256xf32> -> vector<64x256xf32>
    %c0_9 = arith.constant 0 : index
    %c0_10 = arith.constant 0 : index
    %14 = vector.load %arg5[%c0_9, %c0_10] : memref<1x256xf32, #tpu.memory_space<vmem>>, vector<1x256xf32>
    %15 = vector.broadcast %14 : vector<1x256xf32> to vector<64x256xf32>
    %16 = arith.addf %13, %15 : vector<64x256xf32>
    %cst_11 = arith.constant 0.000000e+00 : f32
    %17 = vector.broadcast %cst_11 : f32 to vector<64x256xf32>
    %18 = arith.maximumf %16, %17 : vector<64x256xf32>
    %c0_12 = arith.constant 0 : index
    %c0_13 = arith.constant 0 : index
    %19 = vector.load %arg6[%c0_12, %c0_13] : memref<64x256xf32, #tpu.memory_space<vmem>>, vector<64x256xf32>
    tpu.vector_store %arg6[%c0_12, %c0_13], %18 {strides = array<i32>} : memref<64x256xf32, #tpu.memory_space<vmem>>, vector<64x256xf32>,
    return
  }
  func.func @transform_0(%arg0: i32) -> (i32, i32) {
    %c0_i32 = arith.constant 0 : i32
    %c0_i32_0 = arith.constant 0 : i32
    return %arg0, %c0_i32 : i32, i32
  }
  func.func @transform_1(%arg0: i32) -> (i32, i32) {
    %c0_i32 = arith.constant 0 : i32
    %c0_i32_0 = arith.constant 0 : i32
    %c0_i32_1 = arith.constant 0 : i32
    return %c0_i32, %c0_i32_0 : i32, i32
  }
  func.func @transform_2(%arg0: i32) -> (i32, i32) {
    %c0_i32 = arith.constant 0 : i32
    %c0_i32_0 = arith.constant 0 : i32
    %c0_i32_1 = arith.constant 0 : i32
    return %c0_i32, %c0_i32_0 : i32, i32
  }
  func.func @transform_3(%arg0: i32) -> (i32, i32) {
    %c0_i32 = arith.constant 0 : i32
    %c0_i32_0 = arith.constant 0 : i32
    %c0_i32_1 = arith.constant 0 : i32
    return %c0_i32, %c0_i32_0 : i32, i32
  }
  func.func @transform_4(%arg0: i32) -> (i32, i32) {
    %c0_i32 = arith.constant 0 : i32
    %c0_i32_0 = arith.constant 0 : i32
    %c0_i32_1 = arith.constant 0 : i32
    return %c0_i32, %c0_i32_0 : i32, i32
  }
  func.func @transform_5(%arg0: i32) -> (i32, i32) {
    %c0_i32 = arith.constant 0 : i32
    %c0_i32_0 = arith.constant 0 : i32
    return %arg0, %c0_i32 : i32, i32
  }
}

</mosaic_0001>

<llo_original>
// kernel: _ae_fused.1
$region0: #{_ae_fused.1}
  #allocation0 [shape = 'u32[]', space=smem, size = 0x4, offset = 0x4, fixed_abs, tag = 'smem constant byte address 0x4 - core index']
  #allocation1 [shape = 'u32[144,128]{1,0:T(1,128)}', space=vmem, size = 0x12000, scoped, tag = 'internal scratch']
  %s0 = inlined_call_operand.hbm [shape: f32[256,256], index: 0, kind: input, shape index: {}]
  %s1 = inlined_call_operand.hbm [shape: f32[256,128], index: 1, kind: input, shape index: {}]
  %s2 = inlined_call_operand.vmem [shape: f32[1,128], index: 2, kind: input, shape index: {}]
  %s3 = inlined_call_operand.hbm [shape: f32[128,256], index: 3, kind: input, shape index: {}]
  %s4 = inlined_call_operand.vmem [shape: f32[1,256], index: 4, kind: input, shape index: {}]
  %s5 = inlined_call_operand.hbm [shape: f32[256,256], index: 5, kind: output, shape index: {}]
  %s6 = sld [smem:[#allocation0]]
  $region65: #{_ae_fused.1} parent=0
    _
  %s8 = ssub.s32 1, %s6
  %s9 = scalar_select 0, %s8, %s6
  $region1: #{_ae_fused.1} parent=0
    #allocation2 [shape = 'u8[131072]{0}', space=vmem, size = 0x20000, scoped, tag = 'input window, operand 0']
    #allocation3 [shape = 's32[2]{0}', space=sflag, size = 0x8, scoped, tag = 'scoped memory for _ae_fused.1']
    #allocation4 [shape = 's32[2]{0}', space=sflag, size = 0x8, scoped, tag = 'scoped memory for _ae_fused.1']
    #allocation5 [shape = 'u8[131072]{0}', space=vmem, size = 0x20000, scoped, tag = 'input window, operand 1, single buffered']
    #allocation6 [shape = 's32[1]{0}', space=sflag, size = 0x4, scoped, tag = 'scoped memory for _ae_fused.1']
    #allocation7 [shape = 'u8[131072]{0}', space=vmem, size = 0x20000, scoped, tag = 'input window, operand 3, single buffered']
    #allocation8 [shape = 'u8[131072]{0}', space=vmem, size = 0x20000, scoped, tag = 'output window, operand 0']
    %10 = vsyncpa [#allocation3], 0
    %s11 = scalar_lea.sflag [#allocation3], 1
    %12 = vsyncpa %s11, 0
    %13 = vsyncpa [#allocation6], 0
    %14 = vsyncpa [#allocation4], 0
    %s15 = scalar_lea.sflag [#allocation4], 1
    %16 = vsyncpa %s15, 0
    loop: start=0, step=1, limit=6
    $region2: #{_ae_fused.1} parent=1 // loop_pre_header
      _
    $region3: #{_ae_fused.1} parent=1 // loop_header
      %s18 = sphi 0, %s22
      %p19 = scmp.ge.s32.totalorder %s18, 6
      %s28 = sphi 0, %s30
      %s31 = sphi 0, %s28
      %s32 = sphi 0, %s31
      %s48 = sphi 0, %s32
      %s52 = sphi 0, %s52
      %s54 = sphi 0, %s52
      %s55 = sphi 0, %s54
      %s69 = sphi 0, %s55
      %s73 = sphi 0, %s73
      %s75 = sphi 0, %s73
      %s76 = sphi 0, %s75
      %s90 = sphi 0, %s76
      %s94 = sphi 0, %s94
      %s96 = sphi 0, %s94
      %s97 = sphi 0, %s96
      %s111 = sphi 0, %s97
      %s115 = sphi 0, %s115
      %s117 = sphi 0, %s115
      %s118 = sphi 0, %s117
      %s132 = sphi 0, %s118
      %s138 = sphi 0, %s140
      %s141 = sphi 0, %s138
      %s142 = sphi 0, %s141
      %s158 = sphi 0, %s142
    $region4: #{_ae_fused.1} parent=1 // loop_header_branch
      %21 = sbr.rel (%p19) target = $region8
    $region5: #{_ae_fused.1} parent=1 // loop_body
      %s23 = ssub.s32 %s18, 1
      %s24 = ssub.s32 %s18, 2
      %s25 = sadd.s32 %s18, 1
      %s26 = ssub.s32 %s18, %s25
      %p27 = scmp.eq.s32.totalorder %s26, 0
      %s29 = sadd.s32 %s28, 1
      %s30 = scalar_select %p27, %s28, %s29
      %p33 = pneg %p27
      %p34 = scmp.eq.s32.totalorder %s18, 3
      %p35 = por %p33, %p34
      %p36 = scmp.ne.s32.totalorder %s28, %s31
      %p37 = scmp.eq.s32.totalorder %s18, 0
      %p38 = por %p36, %p37
      %p39 = scmp.ne.s32.totalorder %s28, %s31
      %p40 = scmp.eq.s32.totalorder %s23, 3
      %p41 = por %p39, %p40
      %p42 = scmp.ne.s32.totalorder %s31, %s32
      %p43 = scmp.eq.s32.totalorder %s23, 0
      %p44 = por %p42, %p43
      %p45 = scmp.ne.s32.totalorder %s31, %s32
      %p46 = scmp.eq.s32.totalorder %s24, 3
      %p47 = por %p45, %p46
      %p49 = scmp.ne.s32.totalorder %s32, %s48
      %p50 = scmp.eq.s32.totalorder %s24, 0
      %p51 = por %p49, %p50
      %s53 = sadd.s32 %s52, 1
      %p56 = scmp.eq.s32.totalorder %s18, 3
      %p57 = scmp.ne.s32.totalorder %s52, %s54
      %p58 = scmp.eq.s32.totalorder %s18, 0
      %p59 = por %p57, %p58
      %p60 = scmp.ne.s32.totalorder %s52, %s54
      %p61 = scmp.eq.s32.totalorder %s23, 3
      %p62 = por %p60, %p61
      %p63 = scmp.ne.s32.totalorder %s54, %s55
      %p64 = scmp.eq.s32.totalorder %s23, 0
      %p65 = por %p63, %p64
      %p66 = scmp.ne.s32.totalorder %s54, %s55
      %p67 = scmp.eq.s32.totalorder %s24, 3
      %p68 = por %p66, %p67
      %p70 = scmp.ne.s32.totalorder %s55, %s69
      %p71 = scmp.eq.s32.totalorder %s24, 0
      %p72 = por %p70, %p71
      %s74 = sadd.s32 %s73, 1
      %p77 = scmp.eq.s32.totalorder %s18, 3
      %p78 = scmp.ne.s32.totalorder %s73, %s75
      %p79 = scmp.eq.s32.totalorder %s18, 0
      %p80 = por %p78, %p79
      %p81 = scmp.ne.s32.totalorder %s73, %s75
      %p82 = scmp.eq.s32.totalorder %s23, 3
      %p83 = por %p81, %p82
      %p84 = scmp.ne.s32.totalorder %s75, %s76
      %p85 = scmp.eq.s32.totalorder %s23, 0
      %p86 = por %p84, %p85
      %p87 = scmp.ne.s32.totalorder %s75, %s76
      %p88 = scmp.eq.s32.totalorder %s24, 3
      %p89 = por %p87, %p88
      %p91 = scmp.ne.s32.totalorder %s76, %s90
      %p92 = scmp.eq.s32.totalorder %s24, 0
      %p93 = por %p91, %p92
      %s95 = sadd.s32 %s94, 1
      %p98 = scmp.eq.s32.totalorder %s18, 3
      %p99 = scmp.ne.s32.totalorder %s94, %s96
      %p100 = scmp.eq.s32.totalorder %s18, 0
      %p101 = por %p99, %p100
      %p102 = scmp.ne.s32.totalorder %s94, %s96
      %p103 = scmp.eq.s32.totalorder %s23, 3
      %p104 = por %p102, %p103
      %p105 = scmp.ne.s32.totalorder %s96, %s97
      %p106 = scmp.eq.s32.totalorder %s23, 0
      %p107 = por %p105, %p106
      %p108 = scmp.ne.s32.totalorder %s96, %s97
      %p109 = scmp.eq.s32.totalorder %s24, 3
      %p110 = por %p108, %p109
      %p112 = scmp.ne.s32.totalorder %s97, %s111
      %p113 = scmp.eq.s32.totalorder %s24, 0
      %p114 = por %p112, %p113
      %s116 = sadd.s32 %s115, 1
      %p119 = scmp.eq.s32.totalorder %s18, 3
      %p120 = scmp.ne.s32.totalorder %s115, %s117
      %p121 = scmp.eq.s32.totalorder %s18, 0
      %p122 = por %p120, %p121
      %p123 = scmp.ne.s32.totalorder %s115, %s117
      %p124 = scmp.eq.s32.totalorder %s23, 3
      %p125 = por %p123, %p124
      %p126 = scmp.ne.s32.totalorder %s117, %s118
      %p127 = scmp.eq.s32.totalorder %s23, 0
      %p128 = por %p126, %p127
      %p129 = scmp.ne.s32.totalorder %s117, %s118
      %p130 = scmp.eq.s32.totalorder %s24, 3
      %p131 = por %p129, %p130
      %p133 = scmp.ne.s32.totalorder %s118, %s132
      %p134 = scmp.eq.s32.totalorder %s24, 0
      %p135 = por %p133, %p134
      %s136 = ssub.s32 %s18, %s25
      %p137 = scmp.eq.s32.totalorder %s136, 0
      %s139 = sadd.s32 %s138, 1
      %s140 = scalar_select %p137, %s138, %s139
      %p143 = pneg %p137
      %p144 = scmp.eq.s32.totalorder %s18, 3
      %p145 = por %p143, %p144
      %p146 = scmp.ne.s32.totalorder %s138, %s141
      %p147 = scmp.eq.s32.totalorder %s18, 0
      %p148 = por %p146, %p147
      %p149 = scmp.ne.s32.totalorder %s138, %s141
      %p150 = scmp.eq.s32.totalorder %s23, 3
      %p151 = por %p149, %p150
      %p152 = scmp.ne.s32.totalorder %s141, %s142
      %p153 = scmp.eq.s32.totalorder %s23, 0
      %p154 = por %p152, %p153
      %p155 = scmp.ne.s32.totalorder %s141, %s142
      %p156 = scmp.eq.s32.totalorder %s24, 3
      %p157 = por %p155, %p156
      %p159 = scmp.ne.s32.totalorder %s142, %s158
      %p160 = scmp.eq.s32.totalorder %s24, 0
      %p161 = por %p159, %p160
      %p162 = scmp.le.s32.totalorder 1, %s18
      %p163 = scmp.lt.s32.totalorder %s18, 5
      %p164 = pnand %p162, %p163
      %p165 = pneg %p164
      // Predicated region
      $region9: #{_ae_fused.1} parent=5 // pred_check
        _
      $region10: #{_ae_fused.1} parent=5 // pred_check_branch
        %167 = sbr.rel (%p164) target = $region12
      $region11: #{_ae_fused.1} parent=5 // pred_region
        %s168 = ssub.s32 %s18, 1
        // Predicated region
        $region13: #{_ae_fused.1} parent=11 // pred_check
          %p169 = pneg %p65
        $region14: #{_ae_fused.1} parent=11 // pred_check_branch
          %171 = sbr.rel (%p169) target = $region16
        $region15: #{_ae_fused.1} parent=11 // pred_region
          %s173 = ssub.s32 4096, 4096
          %174 = vsyncadd [#allocation6], %s173
          %s175 = sshll.u32 [#allocation5], 4
          %s176 = int_to_ptr.vmem [resolvable:$true] %s175
          %181 = dma.hbm_to_vmem [thread:$0]  %s1, 4096, %s176, [#allocation6], 128, 128, 8
        $region16: #{_ae_fused.1} parent=11 // pred_fallthru
          _
        // Predicated region
        $region17: #{_ae_fused.1} parent=11 // pred_check
          %p182 = pneg %p86
        $region18: #{_ae_fused.1} parent=11 // pred_check_branch
          %184 = sbr.rel (%p182) target = $region20
        $region19: #{_ae_fused.1} parent=11 // pred_region
          _
        $region20: #{_ae_fused.1} parent=11 // pred_fallthru
          _
        // Predicated region
        $region21: #{_ae_fused.1} parent=11 // pred_check
          %p185 = pneg %p107
        $region22: #{_ae_fused.1} parent=11 // pred_check_branch
          %187 = sbr.rel (%p185) target = $region24
        $region23: #{_ae_fused.1} parent=11 // pred_region
          %s189 = ssub.s32 4096, 4096
          %190 = vsyncadd [#allocation6], %s189
          %s191 = sshll.u32 [#allocation7], 4
          %s192 = int_to_ptr.vmem [resolvable:$true] %s191
          %197 = dma.hbm_to_vmem [thread:$0]  %s3, 4096, %s192, [#allocation6], 256, 256, 16
        $region24: #{_ae_fused.1} parent=11 // pred_fallthru
          _
        // Predicated region
        $region25: #{_ae_fused.1} parent=11 // pred_check
          %p198 = pneg %p128
        $region26: #{_ae_fused.1} parent=11 // pred_check_branch
          %200 = sbr.rel (%p198) target = $region28
        $region27: #{_ae_fused.1} parent=11 // pred_region
          _
        $region28: #{_ae_fused.1} parent=11 // pred_fallthru
          _
      $region12: #{_ae_fused.1} parent=5 // pred_fallthru
        _
      %p201 = scmp.lt.s32.totalorder %s18, 4
      // Predicated region
      $region29: #{_ae_fused.1} parent=5 // pred_check
        %p202 = pneg %p201
      $region30: #{_ae_fused.1} parent=5 // pred_check_branch
        %204 = sbr.rel (%p202) target = $region32
      $region31: #{_ae_fused.1} parent=5 // pred_region
        // Predicated region
        $region33: #{_ae_fused.1} parent=31 // pred_check
          %p205 = pneg %p38
        $region34: #{_ae_fused.1} parent=31 // pred_check_branch
          %207 = sbr.rel (%p205) target = $region36
        $region35: #{_ae_fused.1} parent=31 // pred_region
          %s208 = sand.u32 %s28, 1
          %s209 = scalar_lea.sflag [#allocation3], %s208
          %s210 = sand.u32 %s28, 1
          %s211 = smul.addr %s210, 128
          %s212 = scalar_lea.vmem [#allocation2], %s211
          %s213 = smul.u32 8, %s18
          %s215 = ssub.s32 2048, 2048
          %216 = vsyncadd %s209, %s215
          %s217 = smul.addr %s213, 2
          %s218 = smul.addr %s217, 128
          %s219 = scalar_lea.hbm %s0, %s218
          %s220 = sshll.u32 %s212, 4
          %s221 = int_to_ptr.vmem [resolvable:$true] %s220
          %226 = dma.hbm_to_vmem [thread:$0]  %s219, 2048, %s221, %s209, 256, 256, 16
        $region36: #{_ae_fused.1} parent=31 // pred_fallthru
          _
      $region32: #{_ae_fused.1} parent=5 // pred_fallthru
        _
      %p227 = scmp.le.s32.totalorder 1, %s18
      %p228 = scmp.lt.s32.totalorder %s18, 5
      %p229 = pnand %p227, %p228
      %p230 = pneg %p229
      // Predicated region
      $region37: #{_ae_fused.1} parent=5 // pred_check
        _
      $region38: #{_ae_fused.1} parent=5 // pred_check_branch
        %232 = sbr.rel (%p229) target = $region40
      $region39: #{_ae_fused.1} parent=5 // pred_region
        %s233 = ssub.s32 %s18, 1
        %s234 = sand.u32 %s31, 1
        %s235 = scalar_lea.sflag [#allocation3], %s234
        %s236 = sand.u32 %s31, 1
        %s237 = smul.addr %s236, 128
        %s238 = scalar_lea.vmem [#allocation2], %s237
        // Predicated region
        $region41: #{_ae_fused.1} parent=39 // pred_check
          %p239 = pneg %p44
        $region42: #{_ae_fused.1} parent=39 // pred_check_branch
          %241 = sbr.rel (%p239) target = $region44
        $region43: #{_ae_fused.1} parent=39 // pred_region
          %242 = dma.done %s235, 2048
        $region44: #{_ae_fused.1} parent=39 // pred_fallthru
          _
        // Predicated region
        $region45: #{_ae_fused.1} parent=39 // pred_check
          %p243 = pneg %p65
        $region46: #{_ae_fused.1} parent=39 // pred_check_branch
          %245 = sbr.rel (%p243) target = $region48
        $region47: #{_ae_fused.1} parent=39 // pred_region
          %246 = dma.done [#allocation6], 4096
        $region48: #{_ae_fused.1} parent=39 // pred_fallthru
          _
        // Predicated region
        $region49: #{_ae_fused.1} parent=39 // pred_check
          %p247 = pneg %p107
        $region50: #{_ae_fused.1} parent=39 // pred_check_branch
          %249 = sbr.rel (%p247) target = $region52
        $region51: #{_ae_fused.1} parent=39 // pred_region
          %250 = dma.done [#allocation6], 4096
        $region52: #{_ae_fused.1} parent=39 // pred_fallthru
          _
        %s251 = sand.u32 %s31, 1
        %s252 = scalar_lea.sflag [#allocation3], %s251
        %s253 = sand.u32 %s31, 1
        %s254 = smul.addr %s253, 128
        %s255 = scalar_lea.vmem [#allocation2], %s254
        %p256 = pneg %p44
        %p257 = pneg %p41
        %p258 = pneg %p65
        %p259 = pneg %p62
        %p260 = pneg %p86
        %p261 = pneg %p83
        %p262 = pneg %p107
        %p263 = pneg %p104
        %p264 = pneg %p128
        %p265 = pneg %p125
        %p266 = pneg %p154
        %p267 = pneg %p151
        %s268 = sand.u32 %s141, 1
        %s269 = scalar_lea.sflag [#allocation4], %s268
        %s270 = sand.u32 %s141, 1
        %s271 = smul.addr %s270, 128
        %s272 = scalar_lea.vmem [#allocation8], %s271
        %s273 = smul.u32 8, %s23
        %s274 = smul.u32 8, %s23
        %v276 = vld [vmem:[%s238] sm:$0xff]
        %v277 = vld [vmem:[%s238 + $0x8] sm:$0xff]
        %v278 = vld [vmem:[%s238 + $0x10] sm:$0xff]
        %v279 = vld [vmem:[%s238 + $0x18] sm:$0xff]
        %v280 = vld [vmem:[%s238 + $0x20] sm:$0xff]
        %v281 = vld [vmem:[%s238 + $0x28] sm:$0xff]
        %v282 = vld [vmem:[%s238 + $0x30] sm:$0xff]
        %v283 = vld [vmem:[%s238 + $0x38] sm:$0xff]
        %v284 = vld [vmem:[%s238 + $0x40] sm:$0xff]
        %v285 = vld [vmem:[%s238 + $0x48] sm:$0xff]
        %v286 = vld [vmem:[%s238 + $0x50] sm:$0xff]
        %v287 = vld [vmem:[%s238 + $0x58] sm:$0xff]
        %v288 = vld [vmem:[%s238 + $0x60] sm:$0xff]
        %v289 = vld [vmem:[%s238 + $0x68] sm:$0xff]
        %v290 = vld [vmem:[%s238 + $0x70] sm:$0xff]
        %v291 = vld [vmem:[%s238 + $0x78] sm:$0xff]
        %v292 = vpack.c.bf16 %v278, %v276
        %v293 = vpack.c.bf16 %v279, %v277
        %v294 = vpack.c.bf16 %v282, %v280
        %v295 = vpack.c.bf16 %v283, %v281
        %v296 = vpack.c.bf16 %v286, %v284
        %v297 = vpack.c.bf16 %v287, %v285
        %v298 = vpack.c.bf16 %v290, %v288
        %v299 = vpack.c.bf16 %v291, %v289
        %v300 = vld [vmem:[#allocation5] sm:$0xff]
        %v301 = vld [vmem:[#allocation5 + $0x8] sm:$0xff]
        %v302 = vld [vmem:[#allocation5 + $0x10] sm:$0xff]
        %v303 = vld [vmem:[#allocation5 + $0x18] sm:$0xff]
        %v304 = vld [vmem:[#allocation5 + $0x20] sm:$0xff]
        %v305 = vld [vmem:[#allocation5 + $0x28] sm:$0xff]
        %v306 = vld [vmem:[#allocation5 + $0x30] sm:$0xff]
        %v307 = vld [vmem:[#allocation5 + $0x38] sm:$0xff]
        %v308 = vld [vmem:[#allocation5 + $0x40] sm:$0xff]
        %v309 = vld [vmem:[#allocation5 + $0x48] sm:$0xff]
        %v310 = vld [vmem:[#allocation5 + $0x50] sm:$0xff]
        %v311 = vld [vmem:[#allocation5 + $0x58] sm:$0xff]
        %v312 = vld [vmem:[#allocation5 + $0x60] sm:$0xff]
        %v313 = vld [vmem:[#allocation5 + $0x68] sm:$0xff]
        %v314 = vld [vmem:[#allocation5 + $0x70] sm:$0xff]
        %v315 = vld [vmem:[#allocation5 + $0x78] sm:$0xff]
        %v316 = vld [vmem:[#allocation5 + $0x80] sm:$0xff]
        %v317 = vld [vmem:[#allocation5 + $0x88] sm:$0xff]
        %v318 = vld [vmem:[#allocation5 + $0x90] sm:$0xff]
        %v319 = vld [vmem:[#allocation5 + $0x98] sm:$0xff]
        %v320 = vld [vmem:[#allocation5 + $0xa0] sm:$0xff]
        %v321 = vld [vmem:[#allocation5 + $0xa8] sm:$0xff]
        %v322 = vld [vmem:[#allocation5 + $0xb0] sm:$0xff]
        %v323 = vld [vmem:[#allocation5 + $0xb8] sm:$0xff]
        %v324 = vld [vmem:[#allocation5 + $0xc0] sm:$0xff]
        %v325 = vld [vmem:[#allocation5 + $0xc8] sm:$0xff]
        %v326 = vld [vmem:[#allocation5 + $0xd0] sm:$0xff]
        %v327 = vld [vmem:[#allocation5 + $0xd8] sm:$0xff]
        %v328 = vld [vmem:[#allocation5 + $0xe0] sm:$0xff]
        %v329 = vld [vmem:[#allocation5 + $0xe8] sm:$0xff]
        %v330 = vld [vmem:[#allocation5 + $0xf0] sm:$0xff]
        %v331 = vld [vmem:[#allocation5 + $0xf8] sm:$0xff]
        %v332 = vpack.c.bf16 %v301, %v300
        %v333 = vpack.c.bf16 %v303, %v302
        %v334 = vpack.c.bf16 %v305, %v304
        %v335 = vpack.c.bf16 %v307, %v306
        %v336 = vpack.c.bf16 %v309, %v308
        %v337 = vpack.c.bf16 %v311, %v310
        %v338 = vpack.c.bf16 %v313, %v312
        %v339 = vpack.c.bf16 %v315, %v314
        %v340 = vpack.c.bf16 %v317, %v316
        %v341 = vpack.c.bf16 %v319, %v318
        %v342 = vpack.c.bf16 %v321, %v320
        %v343 = vpack.c.bf16 %v323, %v322
        %v344 = vpack.c.bf16 %v325, %v324
        %v345 = vpack.c.bf16 %v327, %v326
        %v346 = vpack.c.bf16 %v329, %v328
        %v347 = vpack.c.bf16 %v331, %v330
        %v348 = vld [vmem:[%s2] sm:$0x1]
        %v350 = vlaneseq
        %v351 = vshrl.u32 %v350, 7
        %v352 = vsub.s32 0, %v351
        %v353 = vrot.slane %v348, %v352
        %355 = vmatprep.subr.bf16.mxu0 0
        %356 = vmatpush1.bf16.msra.mxu0 %v332
        %357 = vmatprep.subr.bf16.mxu0 0
        %358 = vmatpush1.bf16.msra.mxu0 %v333
        %359 = vmatprep.subr.bf16.mxu0 0
        %360 = vmatpush1.bf16.msra.mxu0 %v334
        %361 = vmatprep.subr.bf16.mxu0 0
        %362 = vmatpush1.bf16.msra.mxu0 %v335
        %363 = vmatprep.subr.bf16.mxu0 0
        %364 = vmatpush1.bf16.msra.mxu0 %v336
        %365 = vmatprep.subr.bf16.mxu0 0
        %366 = vmatpush1.bf16.msra.mxu0 %v337
        %367 = vmatprep.subr.bf16.mxu0 0
        %368 = vmatpush1.bf16.msra.mxu0 %v338
        %369 = vmatprep.subr.bf16.mxu0 0
        %370 = vmatpush1.bf16.msra.mxu0 %v339
        %371 = vmatprep.subr.bf16.mxu0 0
        %372 = vmatpush1.bf16.msra.mxu0 %v340
        %373 = vmatprep.subr.bf16.mxu0 0
        %374 = vmatpush1.bf16.msra.mxu0 %v341
        %375 = vmatprep.subr.bf16.mxu0 0
        %376 = vmatpush1.bf16.msra.mxu0 %v342
        %377 = vmatprep.subr.bf16.mxu0 0
        %378 = vmatpush1.bf16.msra.mxu0 %v343
        %379 = vmatprep.subr.bf16.mxu0 0
        %380 = vmatpush1.bf16.msra.mxu0 %v344
        %381 = vmatprep.subr.bf16.mxu0 0
        %382 = vmatpush1.bf16.msra.mxu0 %v345
        %383 = vmatprep.subr.bf16.mxu0 0
        %384 = vmatpush1.bf16.msra.mxu0 %v346
        %385 = vmatprep.subr.bf16.mxu0 0
        %386 = vmatpush1.bf16.msra.mxu0 %v347
        %387 = vmatprep.mubr.bf16.mxu0 %v293
        %388 = vmatmul.mubr.bf16.gmra.mrb[0].mxu0 %v292
        %v389 = vpop.f32.mrb[0].mxu0
        %v390 = vadd.f32 %v353, %v389
        %v391 = vpop.f32.mrb[0].mxu0
        %v392 = vpop.f32.mrb[0].mxu0
        %v393 = vadd.f32 %v353, %v392
        %v394 = vpop.f32.mrb[0].mxu0
        %395 = vmatprep.mubr.bf16.mxu0 %v295
        %396 = vmatmul.mubr.bf16.gmra.mrb[0].mxu0 %v294
        %v397 = vpop.f32.mrb[0].mxu0
        %v398 = vadd.f32 %v353, %v397
        %v399 = vpop.f32.mrb[0].mxu0
        %v400 = vpop.f32.mrb[0].mxu0
        %v401 = vadd.f32 %v353, %v400
        %v402 = vpop.f32.mrb[0].mxu0
        %403 = vmatprep.mubr.bf16.mxu0 %v297
        %404 = vmatmul.mubr.bf16.gmra.mrb[0].mxu0 %v296
        %v405 = vpop.f32.mrb[0].mxu0
        %v406 = vadd.f32 %v353, %v405
        %v407 = vpop.f32.mrb[0].mxu0
        %v408 = vpop.f32.mrb[0].mxu0
        %v409 = vadd.f32 %v353, %v408
        %v410 = vpop.f32.mrb[0].mxu0
        %411 = vmatprep.mubr.bf16.mxu0 %v299
        %412 = vmatmul.mubr.bf16.gmra.mrb[0].mxu0 %v298
        %v413 = vpop.f32.mrb[0].mxu0
        %v414 = vadd.f32 %v353, %v413
        %v415 = vpop.f32.mrb[0].mxu0
        %v416 = vpop.f32.mrb[0].mxu0
        %v417 = vadd.f32 %v353, %v416
        %v418 = vpop.f32.mrb[0].mxu0
        %419 = vdwg.mxu0
        %v420 = vmax.f32 %v390, 0.0
        %v421 = vmax.f32 %v393, 0.0
        %v422 = vmax.f32 %v398, 0.0
        %v423 = vmax.f32 %v401, 0.0
        %v424 = vmax.f32 %v406, 0.0
        %v425 = vmax.f32 %v409, 0.0
        %v426 = vmax.f32 %v414, 0.0
        %v427 = vmax.f32 %v417, 0.0
        %v428 = vpack.c.bf16 %v421, %v420
        %v429 = vpack.c.bf16 %v423, %v422
        %v430 = vpack.c.bf16 %v425, %v424
        %v431 = vpack.c.bf16 %v427, %v426
        %v432 = vld [vmem:[#allocation7] sm:$0xff]
        %v433 = vld [vmem:[#allocation7 + $0x8] sm:$0xff]
        %v434 = vld [vmem:[#allocation7 + $0x10] sm:$0xff]
        %v435 = vld [vmem:[#allocation7 + $0x18] sm:$0xff]
        %v436 = vld [vmem:[#allocation7 + $0x20] sm:$0xff]
        %v437 = vld [vmem:[#allocation7 + $0x28] sm:$0xff]
        %v438 = vld [vmem:[#allocation7 + $0x30] sm:$0xff]
        %v439 = vld [vmem:[#allocation7 + $0x38] sm:$0xff]
        %v440 = vld [vmem:[#allocation7 + $0x40] sm:$0xff]
        %v441 = vld [vmem:[#allocation7 + $0x48] sm:$0xff]
        %v442 = vld [vmem:[#allocation7 + $0x50] sm:$0xff]
        %v443 = vld [vmem:[#allocation7 + $0x58] sm:$0xff]
        %v444 = vld [vmem:[#allocation7 + $0x60] sm:$0xff]
        %v445 = vld [vmem:[#allocation7 + $0x68] sm:$0xff]
        %v446 = vld [vmem:[#allocation7 + $0x70] sm:$0xff]
        %v447 = vld [vmem:[#allocation7 + $0x78] sm:$0xff]
        %v448 = vld [vmem:[#allocation7 + $0x80] sm:$0xff]
        %v449 = vld [vmem:[#allocation7 + $0x88] sm:$0xff]
        %v450 = vld [vmem:[#allocation7 + $0x90] sm:$0xff]
        %v451 = vld [vmem:[#allocation7 + $0x98] sm:$0xff]
        %v452 = vld [vmem:[#allocation7 + $0xa0] sm:$0xff]
        %v453 = vld [vmem:[#allocation7 + $0xa8] sm:$0xff]
        %v454 = vld [vmem:[#allocation7 + $0xb0] sm:$0xff]
        %v455 = vld [vmem:[#allocation7 + $0xb8] sm:$0xff]
        %v456 = vld [vmem:[#allocation7 + $0xc0] sm:$0xff]
        %v457 = vld [vmem:[#allocation7 + $0xc8] sm:$0xff]
        %v458 = vld [vmem:[#allocation7 + $0xd0] sm:$0xff]
        %v459 = vld [vmem:[#allocation7 + $0xd8] sm:$0xff]
        %v460 = vld [vmem:[#allocation7 + $0xe0] sm:$0xff]
        %v461 = vld [vmem:[#allocation7 + $0xe8] sm:$0xff]
        %v462 = vld [vmem:[#allocation7 + $0xf0] sm:$0xff]
        %v463 = vld [vmem:[#allocation7 + $0xf8] sm:$0xff]
        %v464 = vpack.c.bf16 %v434, %v432
        %v465 = vpack.c.bf16 %v435, %v433
        %v466 = vpack.c.bf16 %v438, %v436
        %v467 = vpack.c.bf16 %v439, %v437
        %v468 = vpack.c.bf16 %v442, %v440
        %v469 = vpack.c.bf16 %v443, %v441
        %v470 = vpack.c.bf16 %v446, %v444
        %v471 = vpack.c.bf16 %v447, %v445
        %v472 = vpack.c.bf16 %v450, %v448
        %v473 = vpack.c.bf16 %v451, %v449
        %v474 = vpack.c.bf16 %v454, %v452
        %v475 = vpack.c.bf16 %v455, %v453
        %v476 = vpack.c.bf16 %v458, %v456
        %v477 = vpack.c.bf16 %v459, %v457
        %v478 = vpack.c.bf16 %v462, %v460
        %v479 = vpack.c.bf16 %v463, %v461
        %v480 = vld [vmem:[%s4] sm:$0x3]
        %v482 = vlaneseq
        %v483 = vshrl.u32 %v482, 7
        %v484 = vsub.s32 0, %v483
        %v485 = vrot.slane %v480, %v484
        %v486 = vlaneseq
        %v487 = vshrl.u32 %v486, 7
        %v488 = vsub.s32 1, %v487
        %v489 = vrot.slane %v480, %v488
        %492 = vmatprep.subr.bf16.mxu0 %v465
        %493 = vmatpush1.bf16.msra.mxu0 %v464
        %494 = vmatprep.subr.bf16.mxu0 %v467
        %495 = vmatpush1.bf16.msra.mxu0 %v466
        %496 = vmatprep.subr.bf16.mxu0 %v469
        %497 = vmatpush1.bf16.msra.mxu0 %v468
        %498 = vmatprep.subr.bf16.mxu0 %v471
        %499 = vmatpush1.bf16.msra.mxu0 %v470
        %500 = vmatprep.subr.bf16.mxu0 %v473
        %501 = vmatpush1.bf16.msra.mxu0 %v472
        %502 = vmatprep.subr.bf16.mxu0 %v475
        %503 = vmatpush1.bf16.msra.mxu0 %v474
        %504 = vmatprep.subr.bf16.mxu0 %v477
        %505 = vmatpush1.bf16.msra.mxu0 %v476
        %506 = vmatprep.subr.bf16.mxu0 %v479
        %507 = vmatpush1.bf16.msra.mxu0 %v478
        %508 = vmatprep.subr.bf16.mxu0 0
        %509 = vmatpush1.bf16.msra.mxu0 0
        %510 = vmatprep.subr.bf16.mxu0 0
        %511 = vmatpush1.bf16.msra.mxu0 0
        %512 = vmatprep.subr.bf16.mxu0 0
        %513 = vmatpush1.bf16.msra.mxu0 0
        %514 = vmatprep.subr.bf16.mxu0 0
        %515 = vmatpush1.bf16.msra.mxu0 0
        %516 = vmatprep.subr.bf16.mxu0 0
        %517 = vmatpush1.bf16.msra.mxu0 0
        %518 = vmatprep.subr.bf16.mxu0 0
        %519 = vmatpush1.bf16.msra.mxu0 0
        %520 = vmatprep.subr.bf16.mxu0 0
        %521 = vmatpush1.bf16.msra.mxu0 0
        %522 = vmatprep.subr.bf16.mxu0 0
        %523 = vmatpush1.bf16.msra.mxu0 0
        %524 = vmatprep.mubr.bf16.mxu0 0
        %525 = vmatmul.mubr.bf16.gmra.mrb[0].mxu0 %v428
        %v526 = vpop.f32.mrb[0].mxu0
        %v527 = vadd.f32 %v485, %v526
        %v528 = vpop.f32.mrb[0].mxu0
        %v529 = vadd.f32 %v489, %v528
        %v530 = vpop.f32.mrb[0].mxu0
        %v531 = vadd.f32 %v485, %v530
        %v532 = vpop.f32.mrb[0].mxu0
        %v533 = vadd.f32 %v489, %v532
        %534 = vmatprep.mubr.bf16.mxu0 0
        %535 = vmatmul.mubr.bf16.gmra.mrb[0].mxu0 %v429
        %v536 = vpop.f32.mrb[0].mxu0
        %v537 = vadd.f32 %v485, %v536
        %v538 = vpop.f32.mrb[0].mxu0
        %v539 = vadd.f32 %v489, %v538
        %v540 = vpop.f32.mrb[0].mxu0
        %v541 = vadd.f32 %v485, %v540
        %v542 = vpop.f32.mrb[0].mxu0
        %v543 = vadd.f32 %v489, %v542
        %544 = vmatprep.mubr.bf16.mxu0 0
        %545 = vmatmul.mubr.bf16.gmra.mrb[0].mxu0 %v430
        %v546 = vpop.f32.mrb[0].mxu0
        %v547 = vadd.f32 %v485, %v546
        %v548 = vpop.f32.mrb[0].mxu0
        %v549 = vadd.f32 %v489, %v548
        %v550 = vpop.f32.mrb[0].mxu0
        %v551 = vadd.f32 %v485, %v550
        %v552 = vpop.f32.mrb[0].mxu0
        %v553 = vadd.f32 %v489, %v552
        %554 = vmatprep.mubr.bf16.mxu0 0
        %555 = vmatmul.mubr.bf16.gmra.mrb[0].mxu0 %v431
        %v556 = vpop.f32.mrb[0].mxu0
        %v557 = vadd.f32 %v485, %v556
        %v558 = vpop.f32.mrb[0].mxu0
        %v559 = vadd.f32 %v489, %v558
        %v560 = vpop.f32.mrb[0].mxu0
        %v561 = vadd.f32 %v485, %v560
        %v562 = vpop.f32.mrb[0].mxu0
        %v563 = vadd.f32 %v489, %v562
        %564 = vdwg.mxu0
        %v565 = vmax.f32 %v527, 0.0
        %v566 = vmax.f32 %v529, 0.0
        %v567 = vmax.f32 %v531, 0.0
        %v568 = vmax.f32 %v533, 0.0
        %v569 = vmax.f32 %v537, 0.0
        %v570 = vmax.f32 %v539, 0.0
        %v571 = vmax.f32 %v541, 0.0
        %v572 = vmax.f32 %v543, 0.0
        %v573 = vmax.f32 %v547, 0.0
        %v574 = vmax.f32 %v549, 0.0
        %v575 = vmax.f32 %v551, 0.0
        %v576 = vmax.f32 %v553, 0.0
        %v577 = vmax.f32 %v557, 0.0
        %v578 = vmax.f32 %v559, 0.0
        %v579 = vmax.f32 %v561, 0.0
        %v580 = vmax.f32 %v563, 0.0
        %581 = vst [vmem:[%s272] sm:$0xff] %v565
        %582 = vst [vmem:[%s272 + $0x8] sm:$0xff] %v566
        %583 = vst [vmem:[%s272 + $0x10] sm:$0xff] %v567
        %584 = vst [vmem:[%s272 + $0x18] sm:$0xff] %v568
        %585 = vst [vmem:[%s272 + $0x20] sm:$0xff] %v569
        %586 = vst [vmem:[%s272 + $0x28] sm:$0xff] %v570
        %587 = vst [vmem:[%s272 + $0x30] sm:$0xff] %v571
        %588 = vst [vmem:[%s272 + $0x38] sm:$0xff] %v572
        %589 = vst [vmem:[%s272 + $0x40] sm:$0xff] %v573
        %590 = vst [vmem:[%s272 + $0x48] sm:$0xff] %v574
        %591 = vst [vmem:[%s272 + $0x50] sm:$0xff] %v575
        %592 = vst [vmem:[%s272 + $0x58] sm:$0xff] %v576
        %593 = vst [vmem:[%s272 + $0x60] sm:$0xff] %v577
        %594 = vst [vmem:[%s272 + $0x68] sm:$0xff] %v578
        %595 = vst [vmem:[%s272 + $0x70] sm:$0xff] %v579
        %596 = vst [vmem:[%s272 + $0x78] sm:$0xff] %v580
        %s597 = sand.u32 %s141, 1
        %s598 = scalar_lea.sflag [#allocation4], %s597
        %s599 = sand.u32 %s141, 1
        %s600 = smul.addr %s599, 128
        %s601 = scalar_lea.vmem [#allocation8], %s600
        // Predicated region
        $region53: #{_ae_fused.1} parent=39 // pred_check
          %p602 = pneg %p151
        $region54: #{_ae_fused.1} parent=39 // pred_check_branch
          %604 = sbr.rel (%p602) target = $region56
        $region55: #{_ae_fused.1} parent=39 // pred_region
          %s605 = smul.u32 8, %s23
          %s607 = ssub.s32 2048, 2048
          %608 = vsyncadd %s598, %s607
          %s609 = smul.addr %s605, 2
          %s610 = smul.addr %s609, 128
          %s611 = scalar_lea.hbm %s5, %s610
          %s612 = sshll.u32 %s601, 4
          %s613 = int_to_ptr.vmem [resolvable:$true] %s612
          %618 = dma.vmem_to_hbm [thread:$0]  %s613, 2048, %s611, %s598, 256, 256, 16
        $region56: #{_ae_fused.1} parent=39 // pred_fallthru
          _
      $region40: #{_ae_fused.1} parent=5 // pred_fallthru
        _
      %p619 = scmp.le.s32.totalorder 2, %s18
      // Predicated region
      $region57: #{_ae_fused.1} parent=5 // pred_check
        %p620 = pneg %p619
      $region58: #{_ae_fused.1} parent=5 // pred_check_branch
        %622 = sbr.rel (%p620) target = $region60
      $region59: #{_ae_fused.1} parent=5 // pred_region
        %s623 = ssub.s32 %s18, 2
        // Predicated region
        $region61: #{_ae_fused.1} parent=59 // pred_check
          %p624 = pneg %p157
        $region62: #{_ae_fused.1} parent=59 // pred_check_branch
          %626 = sbr.rel (%p624) target = $region64
        $region63: #{_ae_fused.1} parent=59 // pred_region
          %s627 = sand.u32 %s142, 1
          %s628 = scalar_lea.sflag [#allocation4], %s627
          %s629 = sand.u32 %s142, 1
          %s630 = smul.addr %s629, 128
          %s631 = scalar_lea.vmem [#allocation8], %s630
          %632 = dma.done %s628, 2048
        $region64: #{_ae_fused.1} parent=59 // pred_fallthru
          _
      $region60: #{_ae_fused.1} parent=5 // pred_fallthru
        _
    $region6: #{_ae_fused.1} parent=1 // loop_footer
      %s22 = sadd.s32 1, %s18
    $region7: #{_ae_fused.1} parent=1 // loop_footer_branch
      %17 = sbr.rel target = $region3
    $region8: #{_ae_fused.1} parent=1 // loop_exit
      _
    %633 = vsyncpa [#allocation3], 1
    %s634 = scalar_lea.sflag [#allocation3], 1
    %635 = vsyncpa %s634, 1
    %636 = vsyncpa [#allocation6], 1
    %637 = vsyncpa [#allocation4], 1
    %s638 = scalar_lea.sflag [#allocation4], 1
    %639 = vsyncpa %s638, 1

</llo_original>
